<compile_context>
chip_gen: v7x
topology: tpu7x:2x2x1
jax: 0.10.0
libtpu: 0.0.40
codegen_flags: <defaults>
</compile_context>

<pallas_src>
import functools

import jax
import jax.numpy as jnp
from jax import lax
from jax.experimental import pallas as pl
from jax.experimental.pallas import tpu as pltpu


def _round_up(x, m):
    return ((x + m - 1) // m) * m


def _cdiv(a, b):
    return -(-a // b)


def _sublane(dtype):
    # sublane packing: 8 rows for 4-byte, 16 for 2-byte, 32 for 1-byte dtypes.
    return {4: 8, 2: 16, 1: 32}[jnp.dtype(dtype).itemsize]


# ---------------------------------------------------------------------------
# Projection kernel: (B, T, D) @ (D, Uo) -> (B, T, Uo), optional scalar scale.
# ---------------------------------------------------------------------------
def _project_kernel(x_ref, w_ref, o_ref, *, scale):
    y = jnp.dot(x_ref[0], w_ref[...], preferred_element_type=jnp.float32)
    if scale is not None:
        y = y * scale
    o_ref[0] = y.astype(o_ref.dtype)


def _project(x, w, *, scale, tile, out_dtype):
    B, T, D = x.shape
    Uo = w.shape[1]
    nt = T // tile
    return pl.pallas_call(
        functools.partial(_project_kernel, scale=scale),
        out_shape=jax.ShapeDtypeStruct((B, T, Uo), out_dtype),
        grid_spec=pltpu.PrefetchScalarGridSpec(
            num_scalar_prefetch=0,
            grid=(B, nt),
            in_specs=[
                pl.BlockSpec((1, tile, D), lambda b, t: (b, t, 0)),
                pl.BlockSpec((D, Uo), lambda b, t: (0, 0)),
            ],
            out_specs=pl.BlockSpec((1, tile, Uo), lambda b, t: (b, t, 0)),
        ),
        compiler_params=pltpu.CompilerParams(
            dimension_semantics=("parallel", "parallel"),
            vmem_limit_bytes=40 * 1024 * 1024,
        ),
    )(x, w)


# ---------------------------------------------------------------------------
# Flash attention kernel over pre-projected Q and concatenated K|V.
# ---------------------------------------------------------------------------
def _flash_attn_kernel(q_ref, kv_ref, bias_ref, o_ref,
                       m_sc, l_sc, acc_sc, *, up, approx_recip):
    # q_ref:   (1, tq, Up)   projected, scale folded in, compute dtype
    # kv_ref:  (1, tk, 2Up)  projected keys | values, compute dtype
    # bias_ref:(1, tk)       additive key-padding bias (0 or -1e30), f32
    # o_ref:   (1, tq, Up)
    kv_i = pl.program_id(2)

    @pl.when(kv_i == 0)
    def _init():
        m_sc[...] = jnp.full_like(m_sc, -jnp.inf)
        l_sc[...] = jnp.zeros_like(l_sc)
        acc_sc[...] = jnp.zeros_like(acc_sc)

    q = q_ref[0]                         # (tq, Up)
    keys = kv_ref[0, :, 0:up]            # (tk, Up) — 128-aligned static slice
    values = kv_ref[0, :, up:2 * up]     # (tk, Up)

    # Scores: contract last dims of both operands (no explicit K transpose).
    s = lax.dot_general(q, keys,
                        dimension_numbers=(((1,), (1,)), ((), ())),
                        preferred_element_type=jnp.float32)
    s = s + bias_ref[...]                # broadcast (1, tk) add masks padding

    # Online softmax update.
    m_prev = m_sc[...]
    m_new = jnp.maximum(m_prev, jnp.max(s, axis=-1, keepdims=True))
    alpha = jnp.exp(m_prev - m_new)
    p = jnp.exp(s - m_new)
    l_sc[...] = alpha * l_sc[...] + jnp.sum(p, axis=-1, keepdims=True)
    acc_sc[...] = alpha * acc_sc[...] + jnp.dot(
        p.astype(values.dtype), values, preferred_element_type=jnp.float32)
    m_sc[...] = m_new

    @pl.when(kv_i == pl.num_programs(2) - 1)
    def _finalize():
        inv_l = pl.reciprocal(l_sc[...], approx=approx_recip)
        o_ref[0] = (acc_sc[...] * inv_l).astype(o_ref.dtype)


def dot_attention(query, key, w_query, w_key, w_value, key_dim, *,
                  tq_tile=512, tk_tile=1024, compute_dtype=jnp.bfloat16):
    """query: (B, Tq, Dq), key: (B, Tk, Dk); weights are (in, out).

    compute_dtype controls the MXU operand dtype (bf16 default, f32 for
    bit-accurate mode).  Accumulation is always f32.
    """
    B, Tq, Dq = query.shape
    _, Tk, Dk = key.shape
    U = w_query.shape[1]
    scale = 1.0 / (float(key_dim) ** 0.5)
    cdt = jnp.dtype(compute_dtype)
    sub = _sublane(cdt)

    # Lane-dense / MXU-friendly padding.
    Dqp = _round_up(Dq, 128)
    Dkp = _round_up(Dk, 128)
    Up = _round_up(U, 128)
    tq = min(tq_tile, _round_up(Tq, sub))
    tk = min(tk_tile, _round_up(Tk, sub))

    # Keep both v7x TensorCores busy: aim for >= 2 parallel (B, qi) tiles.
    while B * _cdiv(Tq, tq) < 2 and tq > sub:
        new_tq = _round_up(max(tq // 2, sub), sub)
        if new_tq == tq:
            break
        tq = new_tq

    Tqp = _round_up(Tq, tq)
    Tkp = _round_up(Tk, tk)
    nq = Tqp // tq
    nk = Tkp // tk

    qp = jnp.pad(query, ((0, 0), (0, Tqp - Tq), (0, Dqp - Dq))).astype(cdt)
    kp = jnp.pad(key, ((0, 0), (0, Tkp - Tk), (0, Dkp - Dk))).astype(cdt)
    wq_p = jnp.pad(w_query, ((0, Dqp - Dq), (0, Up - U))).astype(cdt)
    # Concatenate W_key | W_value into one (Dkp, 2*Up) weight -> one wide MXU
    # matmul per K tile instead of two half-width ones.
    wk_p = jnp.pad(w_key, ((0, Dkp - Dk), (0, Up - U)))
    wv_p = jnp.pad(w_value, ((0, Dkp - Dk), (0, Up - U)))
    wkv_p = jnp.concatenate([wk_p, wv_p], axis=1).astype(cdt)

    # Additive key-padding bias: 0 for valid columns, -1e30 for padded ones.
    col = jnp.arange(Tkp, dtype=jnp.int32)
    bias = jnp.where(col < Tk, 0.0, -1e30).astype(jnp.float32).reshape(1, Tkp)

    # --- Projections (each computed exactly once) ---------------------------
    q_proj = _project(qp, wq_p, scale=scale, tile=tq, out_dtype=cdt)      # (B,Tqp,Up)
    kv_proj = _project(kp, wkv_p, scale=None, tile=tk, out_dtype=cdt)     # (B,Tkp,2Up)

    # --- Flash attention over projected tensors -----------------------------
    kernel = functools.partial(
        _flash_attn_kernel,
        up=Up,
        approx_recip=(cdt != jnp.dtype(jnp.float32)),
    )

    out = pl.pallas_call(
        kernel,
        out_shape=jax.ShapeDtypeStruct((B, Tqp, Up), query.dtype),
        grid_spec=pltpu.PrefetchScalarGridSpec(
            num_scalar_prefetch=0,
            grid=(B, nq, nk),
            in_specs=[
                pl.BlockSpec((1, tq, Up), lambda b, qi, kv: (b, qi, 0)),
                pl.BlockSpec((1, tk, 2 * Up), lambda b, qi, kv: (b, kv, 0)),
                pl.BlockSpec((1, tk), lambda b, qi, kv: (0, kv)),
            ],
            out_specs=pl.BlockSpec((1, tq, Up), lambda b, qi, kv: (b, qi, 0)),
            scratch_shapes=[
                pltpu.VMEM((tq, 1), jnp.float32),    # running max
                pltpu.VMEM((tq, 1), jnp.float32),    # running denom
                pltpu.VMEM((tq, Up), jnp.float32),   # output accumulator
            ],
        ),
        compiler_params=pltpu.CompilerParams(
            dimension_semantics=("parallel", "parallel", "arbitrary"),
            # <= ~62% of v7x's 64 MiB physical VMEM; plenty for these tiles,
            # raise toward ~96 MiB on v5e/v6e if using much larger tiles.
            vmem_limit_bytes=40 * 1024 * 1024,
        ),
    )(q_proj, kv_proj, bias)

    return out[:, :Tq, :U]


def _reference(query, key, w_query, w_key, w_value, key_dim):
    hp = lax.Precision.HIGHEST
    querys = jnp.einsum("bqd,du->bqu", query, w_query, precision=hp)
    keys = jnp.einsum("bkd,du->bku", key, w_key, precision=hp)
    values = jnp.einsum("bkd,du->bku", key, w_value, precision=hp)
    scores = jnp.einsum("bqu,bku->bqk", querys, keys, precision=hp)
    scores = scores / (key_dim ** 0.5)
    probs = jax.nn.softmax(scores, axis=-1)
    return jnp.einsum("bqk,bku->bqu", probs, values, precision=hp)


if __name__ == "__main__":
    # Small shapes consistent with the module's forward.
    B, Tq, Tk = 2, 8, 8
    query_dim, key_dim, num_units = 32, 32, 32

    root = jax.random.PRNGKey(0)
    kq, kk, kwq, kwk, kwv = jax.random.split(root, 5)

    query = jax.random.normal(kq, (B, Tq, query_dim), dtype=jnp.float32)
    key = jax.random.normal(kk, (B, Tk, key_dim), dtype=jnp.float32)

    # "Linear" weights stored as (in_features, out_features)
    # (transpose of PyTorch nn.Linear.weight); no bias, matching the module.
    w_query = jax.random.normal(kwq, (query_dim, num_units), dtype=jnp.float32) * 0.05
    w_key = jax.random.normal(kwk, (key_dim, num_units), dtype=jnp.float32) * 0.05
    w_value = jax.random.normal(kwv, (key_dim, num_units), dtype=jnp.float32) * 0.05

    ref = _reference(query, key, w_query, w_key, w_value, key_dim)

    # f32 compute path: bit-accurate check.
    out_f32 = dot_attention(query, key, w_query, w_key, w_value, key_dim,
                            compute_dtype=jnp.float32)
    out_f32 = jax.block_until_ready(out_f32)
    assert out_f32.shape == (B, Tq, num_units)
    assert jnp.allclose(out_f32, ref, atol=2e-3, rtol=2e-3), "f32 mismatch vs reference"

    # bf16 compute path (default, MXU-native operands, f32 accumulation).
    out_bf16 = dot_attention(query, key, w_query, w_key, w_value, key_dim)
    out_bf16 = jax.block_until_ready(out_bf16)
    assert out_bf16.shape == (B, Tq, num_units)
    assert jnp.allclose(out_bf16, ref, atol=2e-2, rtol=2e-2), "bf16 mismatch vs reference"

    # TODO(synk): the module's unused `mask` argument is ignored (it is never
    # applied in the original forward either); only key-padding is masked.

    print("KERNEL_OK")
</pallas_src>

<mosaic_0001>
module attributes {stable_mosaic.version = 11 : i64} {
  func.func @_project_kernel(%arg0: i32, %arg1: i32, %arg2: memref<1x8x128xf32, #tpu.memory_space<vmem>>, %arg3: memref<128x128xf32, #tpu.memory_space<vmem>>, %arg4: memref<1x8x128xf32, #tpu.memory_space<vmem>>) attributes {dimension_semantics = [#tpu.dimension_semantics<parallel>, #tpu.dimension_semantics<parallel>], iteration_bounds = array<i64: 2, 1>, scalar_prefetch = 0 : i64, scratch_operands = 0 : i64, tpu.core_type = #tpu.core_type<tc>, window_params = [{transform_indices = @transform_0, window_bounds = array<i64: 1, 8, 128>}, {pipeline_mode = #tpu.pipeline_mode<synchronous>, transform_indices = @transform_1, window_bounds = array<i64: 128, 128>}, {transform_indices = @transform_2, window_bounds = array<i64: 1, 8, 128>}]} {
    %c0 = arith.constant 0 : index
    %c0_0 = arith.constant 0 : index
    %c0_1 = arith.constant 0 : index
    %0 = vector.load %arg2[%c0, %c0_0, %c0_1] : memref<1x8x128xf32, #tpu.memory_space<vmem>>, vector<1x8x128xf32>
    %1 = vector.shape_cast %0 : vector<1x8x128xf32> to vector<8x128xf32>
    %c0_2 = arith.constant 0 : index
    %c0_3 = arith.constant 0 : index
    %2 = vector.load %arg3[%c0_2, %c0_3] : memref<128x128xf32, #tpu.memory_space<vmem>>, vector<128x128xf32>
    %cst = arith.constant dense<0.000000e+00> : vector<8x128xf32>
    %3 = tpu.matmul %1, %2, %cst {dimension_numbers = #tpu.dot_dimension_numbers<[1], [0], [0], [1], [0, 0, 1, 1], [], []>} : vector<8x128xf32>, vector<128x128xf32>, vector<8x128xf32> -> vector<8x128xf32>
    %cst_4 = arith.constant 0.176776692 : f32
    %4 = vector.broadcast %cst_4 : f32 to vector<8x128xf32>
    %5 = arith.mulf %3, %4 : vector<8x128xf32>
    %c0_5 = arith.constant 0 : index
    %c0_6 = arith.constant 0 : index
    %c0_7 = arith.constant 0 : index
    %6 = vector.load %arg4[%c0_5, %c0_6, %c0_7] : memref<1x8x128xf32, #tpu.memory_space<vmem>>, vector<1x8x128xf32>
    %7 = vector.shape_cast %6 : vector<1x8x128xf32> to vector<8x128xf32>
    %8 = vector.shape_cast %5 : vector<8x128xf32> to vector<1x8x128xf32>
    tpu.vector_store %arg4[%c0_5, %c0_6, %c0_7], %8 {strides = array<i32>} : memref<1x8x128xf32, #tpu.memory_space<vmem>>, vector<1x8x128xf32>,
    return
  }
  func.func @transform_0(%arg0: i32, %arg1: i32) -> (i32, i32, i32) {
    %c0_i32 = arith.constant 0 : i32
    %c0_i32_0 = arith.constant 0 : i32
    return %arg0, %arg1, %c0_i32 : i32, i32, i32
  }
  func.func @transform_1(%arg0: i32, %arg1: i32) -> (i32, i32) {
    %c0_i32 = arith.constant 0 : i32
    %c0_i32_0 = arith.constant 0 : i32
    %c0_i32_1 = arith.constant 0 : i32
    return %c0_i32, %c0_i32_0 : i32, i32
  }
  func.func @transform_2(%arg0: i32, %arg1: i32) -> (i32, i32, i32) {
    %c0_i32 = arith.constant 0 : i32
    %c0_i32_0 = arith.constant 0 : i32
    return %arg0, %arg1, %c0_i32 : i32, i32, i32
  }
}

</mosaic_0001>

<llo_original>
// kernel: tpu_custom_call.1
$region0: #{tpu_custom_call.1}
  #allocation0 [shape = 'u32[]', space=smem, size = 0x4, offset = 0x4, fixed_abs, tag = 'smem constant byte address 0x4 - core index']
  #allocation1 [shape = 'u32[144,128]{1,0:T(1,128)}', space=vmem, size = 0x12000, scoped, tag = 'internal scratch']
  %s0 = inlined_call_operand.hbm [shape: f32[2,8,128], index: 0, kind: input, shape index: {}]
  %s1 = inlined_call_operand.hbm [shape: f32[128,128], index: 1, kind: input, shape index: {}]
  %s2 = inlined_call_operand.hbm [shape: f32[2,8,128], index: 2, kind: output, shape index: {}]
  %s3 = sld [smem:[#allocation0]]
  $region49: #{tpu_custom_call.1} parent=0
    _
  %s5 = ssub.s32 1, %s3
  %s6 = scalar_select 0, %s5, %s3
  $region1: #{tpu_custom_call.1} parent=0
    #allocation2 [shape = 'u8[8192]{0}', space=vmem, size = 0x2000, scoped, tag = 'input window, operand 0']
    #allocation3 [shape = 's32[2]{0}', space=sflag, size = 0x8, scoped, tag = 'scoped memory for tpu_custom_call.1']
    #allocation4 [shape = 's32[2]{0}', space=sflag, size = 0x8, scoped, tag = 'scoped memory for tpu_custom_call.1']
    #allocation5 [shape = 'u8[65536]{0}', space=vmem, size = 0x10000, scoped, tag = 'input window, operand 1, single buffered']
    #allocation6 [shape = 's32[1]{0}', space=sflag, size = 0x4, scoped, tag = 'scoped memory for tpu_custom_call.1']
    #allocation7 [shape = 'u8[8192]{0}', space=vmem, size = 0x2000, scoped, tag = 'output window, operand 0']
    %7 = vsyncpa [#allocation3], 0
    %s8 = scalar_lea.sflag [#allocation3], 1
    %9 = vsyncpa %s8, 0
    %10 = vsyncpa [#allocation6], 0
    %11 = vsyncpa [#allocation4], 0
    %s12 = scalar_lea.sflag [#allocation4], 1
    %13 = vsyncpa %s12, 0
    loop: start=0, step=1, limit=4
    $region2: #{tpu_custom_call.1} parent=1 // loop_pre_header
      _
    $region3: #{tpu_custom_call.1} parent=1 // loop_header
      %s15 = sphi 0, %s19
      %p16 = scmp.ge.s32.totalorder %s15, 4
      %s22 = sphi 0, %s34
      %s23 = sphi 0, %s30
      %s24 = sphi 0, %s22
      %s25 = sphi 0, %s23
      %s26 = sphi 0, %s24
      %s27 = sphi 0, %s25
      %s39 = sphi 0, %s41
      %s42 = sphi 0, %s39
      %s43 = sphi 0, %s42
      %s59 = sphi 0, %s43
      %s63 = sphi 0, %s63
      %s65 = sphi 0, %s63
      %s66 = sphi 0, %s65
      %s80 = sphi 0, %s66
      %s88 = sphi 0, %s90
      %s91 = sphi 0, %s88
      %s92 = sphi 0, %s91
      %s108 = sphi 0, %s92
    $region4: #{tpu_custom_call.1} parent=1 // loop_header_branch
      %18 = sbr.rel (%p16) target = $region8
    $region5: #{tpu_custom_call.1} parent=1 // loop_body
      %s20 = ssub.s32 %s15, 1
      %s21 = ssub.s32 %s15, 2
      %s28 = sadd.s32 1, %s23
      %p29 = scmp.ge.s32.totalorder %s28, 1
      %s30 = scalar_select %p29, 0, %s28
      %s31 = sadd.s32 1, %s22
      %s32 = scalar_select %p29, %s31, %s22
      %p33 = scmp.ge.s32.totalorder %s32, 2
      %s34 = scalar_select %p33, 0, %s32
      %s35 = ssub.s32 %s22, %s34
      %s36 = ssub.s32 %s23, %s30
      %s37 = sor.u32 %s35, %s36
      %p38 = scmp.eq.s32.totalorder %s37, 0
      %s40 = sadd.s32 %s39, 1
      %s41 = scalar_select %p38, %s39, %s40
      %p44 = pneg %p38
      %p45 = scmp.eq.s32.totalorder %s15, 1
      %p46 = por %p44, %p45
      %p47 = scmp.ne.s32.totalorder %s39, %s42
      %p48 = scmp.eq.s32.totalorder %s15, 0
      %p49 = por %p47, %p48
      %p50 = scmp.ne.s32.totalorder %s39, %s42
      %p51 = scmp.eq.s32.totalorder %s20, 1
      %p52 = por %p50, %p51
      %p53 = scmp.ne.s32.totalorder %s42, %s43
      %p54 = scmp.eq.s32.totalorder %s20, 0
      %p55 = por %p53, %p54
      %p56 = scmp.ne.s32.totalorder %s42, %s43
      %p57 = scmp.eq.s32.totalorder %s21, 1
      %p58 = por %p56, %p57
      %p60 = scmp.ne.s32.totalorder %s43, %s59
      %p61 = scmp.eq.s32.totalorder %s21, 0
      %p62 = por %p60, %p61
      %s64 = sadd.s32 %s63, 1
      %p67 = scmp.eq.s32.totalorder %s15, 1
      %p68 = scmp.ne.s32.totalorder %s63, %s65
      %p69 = scmp.eq.s32.totalorder %s15, 0
      %p70 = por %p68, %p69
      %p71 = scmp.ne.s32.totalorder %s63, %s65
      %p72 = scmp.eq.s32.totalorder %s20, 1
      %p73 = por %p71, %p72
      %p74 = scmp.ne.s32.totalorder %s65, %s66
      %p75 = scmp.eq.s32.totalorder %s20, 0
      %p76 = por %p74, %p75
      %p77 = scmp.ne.s32.totalorder %s65, %s66
      %p78 = scmp.eq.s32.totalorder %s21, 1
      %p79 = por %p77, %p78
      %p81 = scmp.ne.s32.totalorder %s66, %s80
      %p82 = scmp.eq.s32.totalorder %s21, 0
      %p83 = por %p81, %p82
      %s84 = ssub.s32 %s22, %s34
      %s85 = ssub.s32 %s23, %s30
      %s86 = sor.u32 %s84, %s85
      %p87 = scmp.eq.s32.totalorder %s86, 0
      %s89 = sadd.s32 %s88, 1
      %s90 = scalar_select %p87, %s88, %s89
      %p93 = pneg %p87
      %p94 = scmp.eq.s32.totalorder %s15, 1
      %p95 = por %p93, %p94
      %p96 = scmp.ne.s32.totalorder %s88, %s91
      %p97 = scmp.eq.s32.totalorder %s15, 0
      %p98 = por %p96, %p97
      %p99 = scmp.ne.s32.totalorder %s88, %s91
      %p100 = scmp.eq.s32.totalorder %s20, 1
      %p101 = por %p99, %p100
      %p102 = scmp.ne.s32.totalorder %s91, %s92
      %p103 = scmp.eq.s32.totalorder %s20, 0
      %p104 = por %p102, %p103
      %p105 = scmp.ne.s32.totalorder %s91, %s92
      %p106 = scmp.eq.s32.totalorder %s21, 1
      %p107 = por %p105, %p106
      %p109 = scmp.ne.s32.totalorder %s92, %s108
      %p110 = scmp.eq.s32.totalorder %s21, 0
      %p111 = por %p109, %p110
      %p112 = scmp.le.s32.totalorder 1, %s15
      %p113 = scmp.lt.s32.totalorder %s15, 3
      %p114 = pnand %p112, %p113
      %p115 = pneg %p114
      // Predicated region
      $region9: #{tpu_custom_call.1} parent=5 // pred_check
        _
      $region10: #{tpu_custom_call.1} parent=5 // pred_check_branch
        %117 = sbr.rel (%p114) target = $region12
      $region11: #{tpu_custom_call.1} parent=5 // pred_region
        %s118 = ssub.s32 %s15, 1
        // Predicated region
        $region13: #{tpu_custom_call.1} parent=11 // pred_check
          %p119 = pneg %p76
        $region14: #{tpu_custom_call.1} parent=11 // pred_check_branch
          %121 = sbr.rel (%p119) target = $region16
        $region15: #{tpu_custom_call.1} parent=11 // pred_region
          %s123 = ssub.s32 2048, 2048
          %124 = vsyncadd [#allocation6], %s123
          %s125 = sshll.u32 [#allocation5], 4
          %s126 = int_to_ptr.vmem [resolvable:$true] %s125
          %131 = dma.hbm_to_vmem [thread:$0]  %s1, 2048, %s126, [#allocation6], 128, 128, 8
        $region16: #{tpu_custom_call.1} parent=11 // pred_fallthru
          _
      $region12: #{tpu_custom_call.1} parent=5 // pred_fallthru
        _
      %p132 = scmp.lt.s32.totalorder %s15, 2
      // Predicated region
      $region17: #{tpu_custom_call.1} parent=5 // pred_check
        %p133 = pneg %p132
      $region18: #{tpu_custom_call.1} parent=5 // pred_check_branch
        %135 = sbr.rel (%p133) target = $region20
      $region19: #{tpu_custom_call.1} parent=5 // pred_region
        // Predicated region
        $region21: #{tpu_custom_call.1} parent=19 // pred_check
          %p136 = pneg %p49
        $region22: #{tpu_custom_call.1} parent=19 // pred_check_branch
          %138 = sbr.rel (%p136) target = $region24
        $region23: #{tpu_custom_call.1} parent=19 // pred_region
          %s139 = sand.u32 %s39, 1
          %s140 = scalar_lea.sflag [#allocation3], %s139
          %s141 = sand.u32 %s39, 1
          %s142 = smul.addr %s141, 8
          %s143 = scalar_lea.vmem [#allocation2], %s142
          %s145 = ssub.s32 128, 128
          %146 = vsyncadd %s140, %s145
          %s147 = sadd.s32 %s23, %s22
          %s148 = smul.addr %s147, 128
          %s149 = scalar_lea.hbm %s0, %s148
          %s151 = sshll.u32 %s143, 4
          %s152 = int_to_ptr.vmem [resolvable:$true] %s151
          %154 = dma.hbm_to_vmem [thread:$0]  %s149, 128, %s152, %s140
        $region24: #{tpu_custom_call.1} parent=19 // pred_fallthru
          _
      $region20: #{tpu_custom_call.1} parent=5 // pred_fallthru
        _
      %p155 = scmp.le.s32.totalorder 1, %s15
      %p156 = scmp.lt.s32.totalorder %s15, 3
      %p157 = pnand %p155, %p156
      %p158 = pneg %p157
      // Predicated region
      $region25: #{tpu_custom_call.1} parent=5 // pred_check
        _
      $region26: #{tpu_custom_call.1} parent=5 // pred_check_branch
        %160 = sbr.rel (%p157) target = $region28
      $region27: #{tpu_custom_call.1} parent=5 // pred_region
        %s161 = ssub.s32 %s15, 1
        %s162 = sand.u32 %s42, 1
        %s163 = scalar_lea.sflag [#allocation3], %s162
        %s164 = sand.u32 %s42, 1
        %s165 = smul.addr %s164, 8
        %s166 = scalar_lea.vmem [#allocation2], %s165
        // Predicated region
        $region29: #{tpu_custom_call.1} parent=27 // pred_check
          %p167 = pneg %p55
        $region30: #{tpu_custom_call.1} parent=27 // pred_check_branch
          %169 = sbr.rel (%p167) target = $region32
        $region31: #{tpu_custom_call.1} parent=27 // pred_region
          %170 = dma.done %s163, 128
        $region32: #{tpu_custom_call.1} parent=27 // pred_fallthru
          _
        // Predicated region
        $region33: #{tpu_custom_call.1} parent=27 // pred_check
          %p171 = pneg %p76
        $region34: #{tpu_custom_call.1} parent=27 // pred_check_branch
          %173 = sbr.rel (%p171) target = $region36
        $region35: #{tpu_custom_call.1} parent=27 // pred_region
          %174 = dma.done [#allocation6], 2048
        $region36: #{tpu_custom_call.1} parent=27 // pred_fallthru
          _
        %s175 = sand.u32 %s42, 1
        %s176 = scalar_lea.sflag [#allocation3], %s175
        %s177 = sand.u32 %s42, 1
        %s178 = smul.addr %s177, 8
        %s179 = scalar_lea.vmem [#allocation2], %s178
        %p180 = pneg %p55
        %p181 = pneg %p52
        %p182 = pneg %p76
        %p183 = pneg %p73
        %p184 = pneg %p104
        %p185 = pneg %p101
        %s186 = sand.u32 %s91, 1
        %s187 = scalar_lea.sflag [#allocation4], %s186
        %s188 = sand.u32 %s91, 1
        %s189 = smul.addr %s188, 8
        %s190 = scalar_lea.vmem [#allocation7], %s189
        %v191 = vld [vmem:[%s166] sm:$0xff]
        %v192 = vld [vmem:[#allocation5] sm:$0xff]
        %v193 = vld [vmem:[#allocation5 + $0x8] sm:$0xff]
        %v194 = vld [vmem:[#allocation5 + $0x10] sm:$0xff]
        %v195 = vld [vmem:[#allocation5 + $0x18] sm:$0xff]
        %v196 = vld [vmem:[#allocation5 + $0x20] sm:$0xff]
        %v197 = vld [vmem:[#allocation5 + $0x28] sm:$0xff]
        %v198 = vld [vmem:[#allocation5 + $0x30] sm:$0xff]
        %v199 = vld [vmem:[#allocation5 + $0x38] sm:$0xff]
        %v200 = vld [vmem:[#allocation5 + $0x40] sm:$0xff]
        %v201 = vld [vmem:[#allocation5 + $0x48] sm:$0xff]
        %v202 = vld [vmem:[#allocation5 + $0x50] sm:$0xff]
        %v203 = vld [vmem:[#allocation5 + $0x58] sm:$0xff]
        %v204 = vld [vmem:[#allocation5 + $0x60] sm:$0xff]
        %v205 = vld [vmem:[#allocation5 + $0x68] sm:$0xff]
        %v206 = vld [vmem:[#allocation5 + $0x70] sm:$0xff]
        %v207 = vld [vmem:[#allocation5 + $0x78] sm:$0xff]
        %208 = vmatprep.subr.mxu0 0.0
        %209 = vmatpush1.msra.mxu0 %v192
        %210 = vmatprep.subr.mxu0 0.0
        %211 = vmatpush1.msra.mxu0 %v193
        %212 = vmatprep.subr.mxu0 0.0
        %213 = vmatpush1.msra.mxu0 %v194
        %214 = vmatprep.subr.mxu0 0.0
        %215 = vmatpush1.msra.mxu0 %v195
        %216 = vmatprep.subr.mxu0 0.0
        %217 = vmatpush1.msra.mxu0 %v196
        %218 = vmatprep.subr.mxu0 0.0
        %219 = vmatpush1.msra.mxu0 %v197
        %220 = vmatprep.subr.mxu0 0.0
        %221 = vmatpush1.msra.mxu0 %v198
        %222 = vmatprep.subr.mxu0 0.0
        %223 = vmatpush1.msra.mxu0 %v199
        %224 = vmatprep.subr.mxu0 0.0
        %225 = vmatpush1.msra.mxu0 %v200
        %226 = vmatprep.subr.mxu0 0.0
        %227 = vmatpush1.msra.mxu0 %v201
        %228 = vmatprep.subr.mxu0 0.0
        %229 = vmatpush1.msra.mxu0 %v202
        %230 = vmatprep.subr.mxu0 0.0
        %231 = vmatpush1.msra.mxu0 %v203
        %232 = vmatprep.subr.mxu0 0.0
        %233 = vmatpush1.msra.mxu0 %v204
        %234 = vmatprep.subr.mxu0 0.0
        %235 = vmatpush1.msra.mxu0 %v205
        %236 = vmatprep.subr.mxu0 0.0
        %237 = vmatpush1.msra.mxu0 %v206
        %238 = vmatprep.subr.mxu0 0.0
        %239 = vmatpush1.msra.mxu0 %v207
        %240 = vmatprep.subr.mxu0 0.0
        %241 = vmatpush1.msra.mxu0 0.0
        %242 = vmatprep.subr.mxu0 0.0
        %243 = vmatpush1.msra.mxu0 0.0
        %244 = vmatprep.subr.mxu0 0.0
        %245 = vmatpush1.msra.mxu0 0.0
        %246 = vmatprep.subr.mxu0 0.0
        %247 = vmatpush1.msra.mxu0 0.0
        %248 = vmatprep.subr.mxu0 0.0
        %249 = vmatpush1.msra.mxu0 0.0
        %250 = vmatprep.subr.mxu0 0.0
        %251 = vmatpush1.msra.mxu0 0.0
        %252 = vmatprep.subr.mxu0 0.0
        %253 = vmatpush1.msra.mxu0 0.0
        %254 = vmatprep.subr.mxu0 0.0
        %255 = vmatpush1.msra.mxu0 0.0
        %256 = vmatprep.subr.mxu0 0.0
        %257 = vmatpush1.msra.mxu0 0.0
        %258 = vmatprep.subr.mxu0 0.0
        %259 = vmatpush1.msra.mxu0 0.0
        %260 = vmatprep.subr.mxu0 0.0
        %261 = vmatpush1.msra.mxu0 0.0
        %262 = vmatprep.subr.mxu0 0.0
        %263 = vmatpush1.msra.mxu0 0.0
        %264 = vmatprep.subr.mxu0 0.0
        %265 = vmatpush1.msra.mxu0 0.0
        %266 = vmatprep.subr.mxu0 0.0
        %267 = vmatpush1.msra.mxu0 0.0
        %268 = vmatprep.subr.mxu0 0.0
        %269 = vmatpush1.msra.mxu0 0.0
        %270 = vmatprep.subr.mxu0 0.0
        %271 = vmatpush1.msra.mxu0 0.0
        %272 = vmatprep.mubr.f32.mxu0 0.0
        %273 = vmatmul.mubr.f32.gmra.mrb[0].mxu0 %v191
        %v274 = vpop.f32.mrb[0].mxu0
        %v275 = vadd.f32 0.0, %v274
        %v276 = vpop.f32.mrb[0].mxu0
        %277 = vdwg.mxu0
        %v278 = vmul.f32 %v275, 0.17677669
        %279 = vst [vmem:[%s190] sm:$0xff] %v278
        %s280 = sand.u32 %s91, 1
        %s281 = scalar_lea.sflag [#allocation4], %s280
        %s282 = sand.u32 %s91, 1
        %s283 = smul.addr %s282, 8
        %s284 = scalar_lea.vmem [#allocation7], %s283
        // Predicated region
        $region37: #{tpu_custom_call.1} parent=27 // pred_check
          %p285 = pneg %p101
        $region38: #{tpu_custom_call.1} parent=27 // pred_check_branch
          %287 = sbr.rel (%p285) target = $region40
        $region39: #{tpu_custom_call.1} parent=27 // pred_region
          %s289 = ssub.s32 128, 128
          %290 = vsyncadd %s281, %s289
          %s291 = sadd.s32 %s25, %s24
          %s292 = smul.addr %s291, 128
          %s293 = scalar_lea.hbm %s2, %s292
          %s295 = sshll.u32 %s284, 4
          %s296 = int_to_ptr.vmem [resolvable:$true] %s295
          %298 = dma.vmem_to_hbm [thread:$0]  %s296, 128, %s293, %s281
        $region40: #{tpu_custom_call.1} parent=27 // pred_fallthru
          _
      $region28: #{tpu_custom_call.1} parent=5 // pred_fallthru
        _
      %p299 = scmp.le.s32.totalorder 2, %s15
      // Predicated region
      $region41: #{tpu_custom_call.1} parent=5 // pred_check
        %p300 = pneg %p299
      $region42: #{tpu_custom_call.1} parent=5 // pred_check_branch
        %302 = sbr.rel (%p300) target = $region44
      $region43: #{tpu_custom_call.1} parent=5 // pred_region
        %s303 = ssub.s32 %s15, 2
        // Predicated region
        $region45: #{tpu_custom_call.1} parent=43 // pred_check
          %p304 = pneg %p107
        $region46: #{tpu_custom_call.1} parent=43 // pred_check_branch
          %306 = sbr.rel (%p304) target = $region48
        $region47: #{tpu_custom_call.1} parent=43 // pred_region
          %s307 = sand.u32 %s92, 1
          %s308 = scalar_lea.sflag [#allocation4], %s307
          %s309 = sand.u32 %s92, 1
          %s310 = smul.addr %s309, 8
          %s311 = scalar_lea.vmem [#allocation7], %s310
          %312 = dma.done %s308, 128
        $region48: #{tpu_custom_call.1} parent=43 // pred_fallthru
          _
      $region44: #{tpu_custom_call.1} parent=5 // pred_fallthru
        _
    $region6: #{tpu_custom_call.1} parent=1 // loop_footer
      %s19 = sadd.s32 1, %s15
    $region7: #{tpu_custom_call.1} parent=1 // loop_footer_branch
      %14 = sbr.rel target = $region3
    $region8: #{tpu_custom_call.1} parent=1 // loop_exit
      _
    %313 = vsyncpa [#allocation3], 1
    %s314 = scalar_lea.sflag [#allocation3], 1
    %315 = vsyncpa %s314, 1
    %316 = vsyncpa [#allocation6], 1
    %317 = vsyncpa [#allocation4], 1
    %s318 = scalar_lea.sflag [#allocation4], 1
    %319 = vsyncpa %s318, 1

</llo_original>
